<compile_context>
chip_gen: v6e
topology: v6e:2x2x1
jax: 0.10.0
libtpu: 0.0.40
codegen_flags: <defaults>
</compile_context>

<pallas_src>
import math
import functools

import jax
import jax.numpy as jnp
from jax import lax
from jax.experimental import pallas as pl
from jax.experimental.pallas import tpu as pltpu


def make_pe_table(d_model: int, max_len: int = 5000) -> jnp.ndarray:
    """Deterministic sinusoidal table, shape (max_len, 1, d_model), f32."""
    position = jnp.arange(max_len, dtype=jnp.float32)[:, None]              # (L, 1)
    div_term = jnp.exp(
        jnp.arange(0, d_model, 2, dtype=jnp.float32) * (-math.log(10000.0) / d_model)
    )                                                                        # (D/2,)
    ang = position * div_term                                                # (L, D/2)
    # even columns = sin, odd columns = cos (interleave) -> matches torch code
    pe = jnp.stack([jnp.sin(ang), jnp.cos(ang)], axis=-1).reshape(max_len, d_model)
    return pe[:, None, :]                                                    # (L, 1, D)


_GOLD = 0x9E3779B9
_MIX = 0x85EBCA6B


def _pe_kernel(seed_ref, x_ref, pe_ref, o_ref, *, p: float, block_rows: int):
    # pe is pre-cast to x dtype in the wrapper; broadcasting handles both the
    # 3-D (rows, B, D) + (rows, 1, D) path and the 2-D (rows, W) + (rows, W) path.
    y = x_ref[...] + pe_ref[...]

    if p > 0.0:
        shape = y.shape
        strides = pl.strides_from_shape(shape)

        # Per-element counter with all constant multipliers folded in:
        #   counter = sum_ax iota_ax * (stride_ax * GOLD)  +  base
        #   base    = pid * block_rows * stride_row * GOLD + (seed + 1) * MIX
        # base is a pure scalar (SMEM/sreg), so the full-tile work is just
        # rank iotas, rank multiplies-by-constant and rank adds.
        h = None
        for ax, st in enumerate(strides):
            k = (st * _GOLD) & 0xFFFFFFFF
            term = (lax.broadcasted_iota(jnp.int32, shape, ax).astype(jnp.uint32)
                    * jnp.uint32(k))
            h = term if h is None else h + term

        seed = seed_ref[0].astype(jnp.uint32)
        k_tile = (block_rows * strides[0] * _GOLD) & 0xFFFFFFFF
        base = (pl.program_id(0).astype(jnp.uint32) * jnp.uint32(k_tile)
                + (seed + jnp.uint32(1)) * jnp.uint32(_MIX))
        h = h + base

        # Two xorshift-multiply rounds (lowbias32 minus the final xor-shift):
        # more than enough mixing quality for a dropout mask, 2 fewer
        # full-tile VALU ops per element than before.
        h = h ^ (h >> 16)
        h = h * jnp.uint32(0x7FEB352D)
        h = h ^ (h >> 15)
        h = h * jnp.uint32(0x846CA68B)

        # 24-bit integer threshold compare: keep with probability (1 - p).
        # (Possible further trim for bf16 inputs: one u32 hash per element
        #  pair split into two 16-bit thresholds; not needed for f32.)
        thr24 = min(int(p * (1 << 24)), (1 << 24) - 1)
        r24 = (h >> 8).astype(jnp.int32)
        keep = r24 >= jnp.int32(thr24)
        y = jnp.where(keep, y * (1.0 / (1.0 - p)), jnp.zeros_like(y))

    o_ref[...] = y.astype(o_ref.dtype)


def _chip_budget():
    """Return (target bytes of x per tile, vmem_limit_bytes or None) by TPU gen."""
    try:
        kind = jax.devices()[0].device_kind.lower()
    except Exception:
        kind = ""
    if ("v7" in kind) or ("7x" in kind):
        # v7x: 3.2 TB/s HBM -> big tiles to amortize ~0.35 us/step overhead.
        # Double-buffered x + out = 2*(8+8) = 32 MiB (+ tiny pe) exceeds the
        # 32 MiB default scoped limit, so raise it (64 MiB physical VMEM).
        return 8 * 1024 * 1024, 48 * 1024 * 1024
    if ("v6" in kind) or ("trillium" in kind):
        # v6e: 2*(4+4) = 16 MiB fits the 32 MiB default scoped VMEM.
        return 4 * 1024 * 1024, None
    # v5e / unknown backend: stay inside the 16 MiB default scoped VMEM.
    return 2 * 1024 * 1024, None


def positional_encoding_forward(x, pe, *, seed: int = 0, p: float = 0.2,
                                training: bool = True,
                                block_rows: int | None = None):
    """x: (S, B, D); pe: (max_len, 1, D). Returns dropout(x + pe[:S])."""
    S, B, D = x.shape
    assert pe.shape[0] >= S and pe.shape[1] == 1 and pe.shape[2] == D

    p_eff = float(p) if training else 0.0
    target_bytes, vmem_limit = _chip_budget()
    bytes_per_row = B * D * x.dtype.itemsize

    # Small / odd d_model: flatten to (S, B*D) so output stores are lane-dense
    # (vst vs masked vst.msk).  Real transformer D (multiples of 128) keeps 3-D.
    lane_dense_2d = (D % 128) != 0

    if block_rows is None:
        rows = max(1, target_bytes // max(bytes_per_row, 1))
    else:
        rows = int(block_rows)
    rows = min(rows, S)
    # Give v7x's second TensorCore work (>= 2 grid steps) when S allows it.
    if S >= 16:
        rows = min(rows, pl.cdiv(S, 2))
    if lane_dense_2d and rows < S:
        # 2-D blocks: second-minor block dim must be a multiple of 8 or full extent.
        rows = (rows // 8) * 8
        if rows < 8:
            rows = S
    rows = max(1, min(rows, S))

    grid = (pl.cdiv(S, rows),)
    seed_arr = jnp.asarray([seed], dtype=jnp.int32)
    kernel = functools.partial(_pe_kernel, p=p_eff, block_rows=rows)

    cp_kwargs = dict(dimension_semantics=("parallel",))  # v7x: shard grid over 2 TCs
    if vmem_limit is not None:
        cp_kwargs["vmem_limit_bytes"] = int(vmem_limit)
    compiler_params = pltpu.CompilerParams(**cp_kwargs)

    pe_cast = pe.astype(x.dtype)   # pre-cast once; no per-tile convert, fewer DMA bytes

    if lane_dense_2d:
        W = B * D
        x_in = x.reshape(S, W)
        # Pre-broadcast pe over batch wrapper-side (tiny for small D) so the
        # kernel is a plain same-shape add with a lane-dense minor axis.
        pe_in = jnp.broadcast_to(pe_cast[:S], (S, B, D)).reshape(S, W)
        in_specs = [pl.BlockSpec((rows, W), lambda i, seed: (i, 0)),
                    pl.BlockSpec((rows, W), lambda i, seed: (i, 0))]
        out_spec = pl.BlockSpec((rows, W), lambda i, seed: (i, 0))
        out_shape = jax.ShapeDtypeStruct((S, W), x.dtype)
    else:
        x_in = x
        pe_in = pe_cast
        in_specs = [pl.BlockSpec((rows, B, D), lambda i, seed: (i, 0, 0)),
                    pl.BlockSpec((rows, 1, D), lambda i, seed: (i, 0, 0))]
        out_spec = pl.BlockSpec((rows, B, D), lambda i, seed: (i, 0, 0))
        out_shape = jax.ShapeDtypeStruct((S, B, D), x.dtype)

    out = pl.pallas_call(
        kernel,
        out_shape=out_shape,
        grid_spec=pltpu.PrefetchScalarGridSpec(
            num_scalar_prefetch=1,          # seed lands in SMEM
            grid=grid,
            in_specs=in_specs,
            out_specs=out_spec,
        ),
        compiler_params=compiler_params,
    )(seed_arr, x_in, pe_in)

    return out.reshape(S, B, D) if lane_dense_2d else out


if __name__ == "__main__":
    key = jax.random.PRNGKey(0)
    dropout_p = 0.2

    # --- Path 1: module-scale small shape (D=32 -> lane-dense 2-D path) ---
    S, B, D = 8, 2, 32
    k1, k2 = jax.random.split(key)
    x = jax.random.normal(k1, (S, B, D), dtype=jnp.float32)
    pe = make_pe_table(D, max_len=5000)
    ref = x + pe[:S]

    # Eval-mode pass (dropout is identity) -> exact reference check.
    y_eval = positional_encoding_forward(x, pe, seed=0, p=dropout_p, training=False)
    y_eval = jax.block_until_ready(y_eval)
    assert jnp.allclose(y_eval, ref, atol=1e-5, rtol=1e-5), "eval-mode mismatch (2-D path)"

    # Training-mode pass (stochastic dropout via in-kernel counter hash).
    # TODO(synk): PyTorch's dropout RNG stream cannot be reproduced bit-exactly.
    y_train = positional_encoding_forward(x, pe, seed=1234, p=dropout_p, training=True)
    y_train = jax.block_until_ready(y_train)
    kept = y_train != 0.0
    assert jnp.allclose(
        jnp.where(kept, y_train, 0.0),
        jnp.where(kept, ref / (1.0 - dropout_p), 0.0),
        atol=1e-5, rtol=1e-5,
    ), "training-mode scaling mismatch (2-D path)"

    # --- Path 2: lane-aligned D (D=128 -> 3-D path, multi-tile grid) ---
    S2, B2, D2 = 16, 2, 128
    x2 = jax.random.normal(k2, (S2, B2, D2), dtype=jnp.float32)
    pe2 = make_pe_table(D2, max_len=5000)
    ref2 = x2 + pe2[:S2]

    y2_eval = positional_encoding_forward(x2, pe2, seed=0, p=dropout_p, training=False)
    y2_eval = jax.block_until_ready(y2_eval)
    assert jnp.allclose(y2_eval, ref2, atol=1e-5, rtol=1e-5), "eval-mode mismatch (3-D path)"

    y2_train = positional_encoding_forward(x2, pe2, seed=7, p=dropout_p, training=True)
    y2_train = jax.block_until_ready(y2_train)
    kept2 = y2_train != 0.0
    assert jnp.allclose(
        jnp.where(kept2, y2_train, 0.0),
        jnp.where(kept2, ref2 / (1.0 - dropout_p), 0.0),
        atol=1e-5, rtol=1e-5,
    ), "training-mode scaling mismatch (3-D path)"

    print("KERNEL_OK")
</pallas_src>

<mosaic_0001>
module attributes {stable_mosaic.version = 11 : i64} {
  func.func @_pe_kernel(%arg0: i32, %arg1: memref<1xi32, #tpu.memory_space<smem>>, %arg2: memref<8x64xf32, #tpu.memory_space<vmem>>, %arg3: memref<8x64xf32, #tpu.memory_space<vmem>>, %arg4: memref<8x64xf32, #tpu.memory_space<vmem>>) attributes {dimension_semantics = [#tpu.dimension_semantics<parallel>], iteration_bounds = array<i64: 1>, scalar_prefetch = 1 : i64, scratch_operands = 0 : i64, tpu.core_type = #tpu.core_type<tc>, window_params = [{transform_indices = @transform_0, window_bounds = array<i64: 8, 64>}, {transform_indices = @transform_1, window_bounds = array<i64: 8, 64>}, {transform_indices = @transform_2, window_bounds = array<i64: 8, 64>}]} {
    %c0 = arith.constant 0 : index
    %c0_0 = arith.constant 0 : index
    %0 = vector.load %arg2[%c0, %c0_0] : memref<8x64xf32, #tpu.memory_space<vmem>>, vector<8x64xf32>
    %c0_1 = arith.constant 0 : index
    %c0_2 = arith.constant 0 : index
    %1 = vector.load %arg3[%c0_1, %c0_2] : memref<8x64xf32, #tpu.memory_space<vmem>>, vector<8x64xf32>
    %2 = arith.addf %0, %1 : vector<8x64xf32>
    %c0_3 = arith.constant 0 : index
    %c0_4 = arith.constant 0 : index
    %3 = vector.load %arg4[%c0_3, %c0_4] : memref<8x64xf32, #tpu.memory_space<vmem>>, vector<8x64xf32>
    tpu.vector_store %arg4[%c0_3, %c0_4], %2 {strides = array<i32>} : memref<8x64xf32, #tpu.memory_space<vmem>>, vector<8x64xf32>,
    return
  }
  func.func @transform_0(%arg0: i32, %arg1: memref<1xi32, #tpu.memory_space<smem>>) -> (i32, i32) {
    %c0_i32 = arith.constant 0 : i32
    %c0_i32_0 = arith.constant 0 : i32
    return %arg0, %c0_i32 : i32, i32
  }
  func.func @transform_1(%arg0: i32, %arg1: memref<1xi32, #tpu.memory_space<smem>>) -> (i32, i32) {
    %c0_i32 = arith.constant 0 : i32
    %c0_i32_0 = arith.constant 0 : i32
    return %arg0, %c0_i32 : i32, i32
  }
  func.func @transform_2(%arg0: i32, %arg1: memref<1xi32, #tpu.memory_space<smem>>) -> (i32, i32) {
    %c0_i32 = arith.constant 0 : i32
    %c0_i32_0 = arith.constant 0 : i32
    return %arg0, %c0_i32 : i32, i32
  }
}

</mosaic_0001>

<llo_original>
// kernel: tpu_custom_call.1
$region0: #{tpu_custom_call.1}
  #allocation0 [shape = 'u32[]', space=smem, size = 0x4, offset = 0x4, fixed_abs, tag = 'smem constant byte address 0x4 - core index']
  #allocation1 [shape = 'u32[144,128]{1,0:T(1,128)}', space=vmem, size = 0x12000, scoped, tag = 'internal scratch']
  #allocation2 [shape = 's32[1]{0}', space=sflag, size = 0x4, scoped, tag = 'scoped memory for tpu_custom_call.1']
  #allocation3 [shape = 's32[1]{0:T(128)S(6)}', space=smem, size = 0x200, scoped, tag = 'prefetched SMEM operand 0']
  %s0 = inlined_call_operand.<no memory space> [shape: s32[1], index: 0, kind: input, shape index: {}]
  %s1 = inlined_call_operand.hbm [shape: f32[8,64], index: 1, kind: input, shape index: {}]
  %s2 = inlined_call_operand.hbm [shape: f32[8,64], index: 2, kind: input, shape index: {}]
  %s3 = inlined_call_operand.hbm [shape: f32[8,64], index: 3, kind: output, shape index: {}]
  %s4 = sld [smem:[#allocation0]]
  $region26: #{tpu_custom_call.1} parent=0
    _
  %s6 = ssub.s32 1, %s4
  %s7 = scalar_select 0, %s6, %s4
  %8 = sst [smem:[#allocation3]] %s0
  $region1: #{tpu_custom_call.1} parent=0
    #allocation4 [shape = 'u8[4096]{0}', space=vmem, size = 0x1000, scoped, tag = 'input window, operand 1, single buffered']
    #allocation5 [shape = 's32[1]{0}', space=sflag, size = 0x4, scoped, tag = 'scoped memory for tpu_custom_call.1']
    #allocation6 [shape = 's32[1]{0}', space=sflag, size = 0x4, scoped, tag = 'scoped memory for tpu_custom_call.1']
    #allocation7 [shape = 'u8[4096]{0}', space=vmem, size = 0x1000, scoped, tag = 'input window, operand 2, single buffered']
    #allocation8 [shape = 's32[1]{0}', space=sflag, size = 0x4, scoped, tag = 'scoped memory for tpu_custom_call.1']
    #allocation9 [shape = 'u8[4096]{0}', space=vmem, size = 0x1000, scoped, tag = 'output window, operand 0, single buffered']
    %9 = vsyncpa [#allocation5], 0
    %10 = vsyncpa [#allocation8], 0
    %11 = vsyncpa [#allocation6], 0
    // Predicated region
    $region2: #{tpu_custom_call.1} parent=1 // pred_check
      _
    $region3: #{tpu_custom_call.1} parent=1 // pred_check_branch
      %13 = sbr.rel (0) target = $region5
    $region4: #{tpu_custom_call.1} parent=1 // pred_region
      %s15 = ssub.s32 128, 128
      %16 = vsyncadd [#allocation5], %s15
      %s18 = sshll.u32 [#allocation4], 4
      %s19 = int_to_ptr.vmem [resolvable:$true] %s18
      %21 = dma.hbm_to_vmem [thread:$0]  %s1, 128, %s19, [#allocation5]
    $region5: #{tpu_custom_call.1} parent=1 // pred_fallthru
      _
    // Predicated region
    $region6: #{tpu_custom_call.1} parent=1 // pred_check
      _
    $region7: #{tpu_custom_call.1} parent=1 // pred_check_branch
      %23 = sbr.rel (0) target = $region9
    $region8: #{tpu_custom_call.1} parent=1 // pred_region
      %s25 = ssub.s32 128, 128
      %26 = vsyncadd [#allocation8], %s25
      %s28 = sshll.u32 [#allocation7], 4
      %s29 = int_to_ptr.vmem [resolvable:$true] %s28
      %31 = dma.hbm_to_vmem [thread:$0]  %s2, 128, %s29, [#allocation8]
    $region9: #{tpu_custom_call.1} parent=1 // pred_fallthru
      _
    // Predicated region
    $region10: #{tpu_custom_call.1} parent=1 // pred_check
      _
    $region11: #{tpu_custom_call.1} parent=1 // pred_check_branch
      %33 = sbr.rel (0) target = $region13
    $region12: #{tpu_custom_call.1} parent=1 // pred_region
      %34 = dma.done [#allocation5], 128
    $region13: #{tpu_custom_call.1} parent=1 // pred_fallthru
      _
    // Predicated region
    $region14: #{tpu_custom_call.1} parent=1 // pred_check
      _
    $region15: #{tpu_custom_call.1} parent=1 // pred_check_branch
      %36 = sbr.rel (0) target = $region17
    $region16: #{tpu_custom_call.1} parent=1 // pred_region
      %37 = dma.done [#allocation8], 128
    $region17: #{tpu_custom_call.1} parent=1 // pred_fallthru
      _
    %v38 = vld [vmem:[#allocation4] sm:$0xff]
    %v39 = vld [vmem:[#allocation7] sm:$0xff]
    %v40 = vadd.f32 %v38, %v39
    %vm41 = vcmask 523264
    %42 = vst.msk [vmem:[#allocation9] sm:$0xff] %vm41, %v40
    // Predicated region
    $region18: #{tpu_custom_call.1} parent=1 // pred_check
      _
    $region19: #{tpu_custom_call.1} parent=1 // pred_check_branch
      %44 = sbr.rel (0) target = $region21
    $region20: #{tpu_custom_call.1} parent=1 // pred_region
      %s46 = ssub.s32 128, 128
      %47 = vsyncadd [#allocation6], %s46
      %s49 = sshll.u32 [#allocation9], 4
      %s50 = int_to_ptr.vmem [resolvable:$true] %s49
      %52 = dma.vmem_to_hbm [thread:$0]  %s50, 128, %s3, [#allocation6]
    $region21: #{tpu_custom_call.1} parent=1 // pred_fallthru
      _
    // Predicated region
    $region22: #{tpu_custom_call.1} parent=1 // pred_check
      _
    $region23: #{tpu_custom_call.1} parent=1 // pred_check_branch
      %54 = sbr.rel (0) target = $region25
    $region24: #{tpu_custom_call.1} parent=1 // pred_region
      %55 = dma.done [#allocation6], 128
    $region25: #{tpu_custom_call.1} parent=1 // pred_fallthru
      _
    %56 = vsyncpa [#allocation5], 1
    %57 = vsyncpa [#allocation8], 1
    %58 = vsyncpa [#allocation6], 1

</llo_original>
